<compile_context>
chip_gen: v5e
topology: v5e:2x2
jax: 0.10.0
libtpu: 0.0.40
codegen_flags: <defaults>
</compile_context>

<pallas_src>
import functools

import jax
import jax.numpy as jnp
from jax.experimental import pallas as pl
from jax.experimental.pallas import tpu as pltpu


def _loss_kernel(loss_comb, num_points, logits_ref, labels_ref, fp_ref, homo_ref,
                 out_ref):
    # ---------------- tracking loss: mean 2-class softmax CE over P pairs ----------
    lg = logits_ref[...].astype(jnp.float32)      # (P, 2) native layout, widen in-kernel
    l0 = lg[:, 0:1]                               # (P, 1) logit for class 0
    l1 = lg[:, 1:2]                               # (P, 1) logit for class 1
    lbl = labels_ref[...]                         # (P, 1) integer labels in {0, 1}
    P = lg.shape[0]

    # Closed-form 2-class logsumexp: one exp + one log (vs two exps + one log).
    d = l0 - l1
    lse = jnp.maximum(l0, l1) + jnp.log(1.0 + jnp.exp(-jnp.abs(d)))     # (P, 1)
    true_logit = jnp.where(lbl == 0, l0, l1)                            # (P, 1)
    tracking_loss = jnp.sum(lse - true_logit) * jnp.float32(1.0 / P)

    # ---------------- foot point loss: homography reprojection ---------------------
    h00 = homo_ref[0, 0]; h01 = homo_ref[0, 1]; h02 = homo_ref[0, 2]
    h10 = homo_ref[1, 0]; h11 = homo_ref[1, 1]; h12 = homo_ref[1, 2]
    h20 = homo_ref[2, 0]; h21 = homo_ref[2, 1]; h22 = homo_ref[2, 2]

    fp = fp_ref[...].astype(jnp.float32)          # (N, J*6) single contiguous slab
    N = fp.shape[0]

    sx = jnp.zeros((N, 1), jnp.float32)
    sy = jnp.zeros((N, 1), jnp.float32)
    # J is tiny and static (2 for bbox=False, 1 for bbox=True): unroll over points.
    for j in range(num_points):
        base = 6 * j
        v1x = fp[:, base + 0:base + 1]            # (N, 1) view-1 x
        v1y = fp[:, base + 1:base + 2]            # (N, 1) view-1 y
        v2x = fp[:, base + 3:base + 4]            # (N, 1) view-2 x
        v2y = fp[:, base + 4:base + 5]            # (N, 1) view-2 y

        # NOTE: like the PyTorch reference, no epsilon guard on the homogeneous z.
        den = h20 * v2x + h21 * v2y + h22
        inv_den = pl.reciprocal(den, approx=False)      # exact keeps 1e-5 tolerance
        X = (h00 * v2x + h01 * v2y + h02) * inv_den     # normalized view-2 x
        Y = (h10 * v2x + h11 * v2y + h12) * inv_den     # normalized view-2 y

        dx = v1x - X
        dy = v1y - Y
        sx = sx + dx * dx
        sy = sy + dy * dy

    # torch.norm(view1 - view2_point, dim=-2) on the (N, J, 3) diff:
    #   col 0 = sqrt(sum_j dx^2), col 1 = sqrt(sum_j dy^2), col 2 = 0 exactly
    #   (the homogeneous "1" coordinates cancel), so mean over (N, 3) is:
    foot_point_loss = (jnp.sum(jnp.sqrt(sx)) + jnp.sum(jnp.sqrt(sy))) \
        * jnp.float32(1.0 / (3 * N))

    # ---------------- loss combination (static) ------------------------------------
    if loss_comb == 0:
        loss = tracking_loss + foot_point_loss
    elif loss_comb == 1:
        loss = foot_point_loss
    else:
        loss = tracking_loss

    # single packed scalar output: (loss, tracking, foot, pad)
    out_ref[0, 0] = loss
    out_ref[0, 1] = tracking_loss
    out_ref[0, 2] = foot_point_loss
    out_ref[0, 3] = jnp.float32(0.0)


def loss_func(tracking_pred, foot_point, homo_mat, ground_truth,
              bbox=False, loss_comb=0):
    """Pallas implementation of LossFunc.forward. Returns (loss, tracking, foot).

    Expected (native) shapes, passed to the kernel without transforms:
      tracking_pred : (P, 2)  float
      ground_truth  : (1, P) or (P,) integer labels in {0, 1}
      foot_point    : (N, J, 6) for bbox=False, (N, 6) for bbox=True
      homo_mat      : (3, 3)  float32
    """
    # Bitcast-reshapes only (same element order, no data movement, no extra kernels).
    labels = ground_truth.reshape(-1, 1)                          # (P, 1)
    fp2d = foot_point.reshape(foot_point.shape[0], -1)            # (N, J*6)

    P = tracking_pred.shape[0]
    N = fp2d.shape[0]
    J = fp2d.shape[1] // 6

    cost = pl.CostEstimate(
        flops=int(10 * P + 26 * N * J + 8 * N + 16),
        transcendentals=int(2 * P + N * J + 2 * N),
        bytes_accessed=int(tracking_pred.size * tracking_pred.dtype.itemsize
                           + labels.size * labels.dtype.itemsize
                           + fp2d.size * fp2d.dtype.itemsize
                           + homo_mat.size * homo_mat.dtype.itemsize
                           + 4 * 4),
    )

    kernel = functools.partial(_loss_kernel, loss_comb, J)
    vmem = pl.BlockSpec(memory_space=pltpu.MemorySpace.VMEM)
    smem = pl.BlockSpec(memory_space=pltpu.MemorySpace.SMEM)

    out = pl.pallas_call(
        kernel,
        out_shape=jax.ShapeDtypeStruct((1, 4), jnp.float32),
        in_specs=[vmem, vmem, vmem, smem],
        out_specs=smem,
        cost_estimate=cost,
    )(tracking_pred, labels, fp2d, homo_mat)

    return out[0, 0], out[0, 1], out[0, 2]


def _reference(tracking_pred, foot_point, homo_mat, ground_truth,
               bbox=False, loss_comb=0):
    """Pure-JAX reference mirroring the PyTorch forward."""
    labels = ground_truth.reshape(-1).astype(jnp.int32)
    logp = jax.nn.log_softmax(tracking_pred.astype(jnp.float32), axis=-1)
    tracking_loss = -jnp.mean(logp[jnp.arange(labels.shape[0]), labels])

    if not bbox:
        fp = foot_point.reshape(foot_point.shape[0], foot_point.shape[1], 2, 3)
    else:
        fp = foot_point.reshape(foot_point.shape[0], 1, 2, 3)
    xy = fp[..., :2].astype(jnp.float32)
    ones = jnp.ones(xy.shape[:-1] + (1,), jnp.float32)
    homog = jnp.concatenate([xy, ones], axis=-1)          # (N, J, 2, 3)
    v1 = homog[:, :, 0, :]                                # (N, J, 3)
    v2 = homog[:, :, 1, :]
    v2t = jnp.einsum("ab,njb->nja", homo_mat.astype(jnp.float32), v2)
    v2p = v2t / v2t[..., 2:3]
    diff = v1 - v2p                                       # (N, J, 3)
    norm = jnp.sqrt(jnp.sum(diff * diff, axis=-2))        # norm over dim=-2 -> (N, 3)
    foot_point_loss = jnp.mean(norm)

    if loss_comb == 0:
        loss = tracking_loss + foot_point_loss
    elif loss_comb == 1:
        loss = foot_point_loss
    else:
        loss = tracking_loss
    return loss, tracking_loss, foot_point_loss


if __name__ == "__main__":
    key = jax.random.PRNGKey(0)
    k1, k2, k3, k4 = jax.random.split(key, 4)

    num_pairs = 8          # P
    num_same_persons = 4   # N

    tracking_pred = jax.random.normal(k1, (num_pairs, 2), jnp.float32)
    ground_truth = jax.random.randint(k2, (1, num_pairs), 0, 2).astype(jnp.int32)
    foot_point = jax.random.normal(k3, (num_same_persons, 2, 6), jnp.float32) * 2.0 + 5.0
    homo_mat = jnp.array([[1.0,   0.02,  0.10],
                          [0.01,  1.0,  -0.05],
                          [0.001, 0.002, 1.0]], jnp.float32)

    # main path: bbox=False, combined loss
    loss, tloss, fploss = loss_func(tracking_pred, foot_point, homo_mat,
                                    ground_truth, bbox=False, loss_comb=0)
    jax.block_until_ready(loss)
    ref_loss, ref_t, ref_f = _reference(tracking_pred, foot_point, homo_mat,
                                        ground_truth, bbox=False, loss_comb=0)
    assert jnp.allclose(loss, ref_loss, rtol=1e-5, atol=1e-5)
    assert jnp.allclose(tloss, ref_t, rtol=1e-5, atol=1e-5)
    assert jnp.allclose(fploss, ref_f, rtol=1e-5, atol=1e-5)

    # loss_comb variants (static branch)
    loss1, _, _ = loss_func(tracking_pred, foot_point, homo_mat, ground_truth,
                            bbox=False, loss_comb=1)
    loss2, _, _ = loss_func(tracking_pred, foot_point, homo_mat, ground_truth,
                            bbox=False, loss_comb=2)
    jax.block_until_ready(loss1)
    assert jnp.allclose(loss1, ref_f, rtol=1e-5, atol=1e-5)
    assert jnp.allclose(loss2, ref_t, rtol=1e-5, atol=1e-5)

    # bbox=True path (J == 1)
    foot_point_bbox = jax.random.normal(k4, (num_same_persons, 6), jnp.float32) * 2.0 + 5.0
    loss_b, tloss_b, fploss_b = loss_func(tracking_pred, foot_point_bbox, homo_mat,
                                          ground_truth, bbox=True, loss_comb=0)
    jax.block_until_ready(loss_b)
    ref_lb, ref_tb, ref_fb = _reference(tracking_pred, foot_point_bbox, homo_mat,
                                        ground_truth, bbox=True, loss_comb=0)
    assert jnp.allclose(loss_b, ref_lb, rtol=1e-5, atol=1e-5)
    assert jnp.allclose(tloss_b, ref_tb, rtol=1e-5, atol=1e-5)
    assert jnp.allclose(fploss_b, ref_fb, rtol=1e-5, atol=1e-5)

    print("KERNEL_OK")
</pallas_src>

<mosaic_0001>
module attributes {stable_mosaic.version = 11 : i64} {
  func.func @_loss_kernel(%arg0: memref<8x2xf32, #tpu.memory_space<vmem>>, %arg1: memref<8x1xi32, #tpu.memory_space<vmem>>, %arg2: memref<4x12xf32, #tpu.memory_space<vmem>>, %arg3: memref<3x3xf32, #tpu.memory_space<smem>>, %arg4: memref<1x4xf32, #tpu.memory_space<smem>>) attributes {dimension_semantics = [], scalar_prefetch = 0 : i64, scratch_operands = 0 : i64, tpu.core_type = #tpu.core_type<tc>} {
    %c0 = arith.constant 0 : index
    %c0_0 = arith.constant 0 : index
    %0 = vector.load %arg0[%c0, %c0_0] : memref<8x2xf32, #tpu.memory_space<vmem>>, vector<8x2xf32>
    %1 = vector.extract_strided_slice %0 {offsets = [0, 0], sizes = [8, 1], strides = [1, 1]} : vector<8x2xf32> to vector<8x1xf32>
    %2 = vector.extract_strided_slice %0 {offsets = [0, 1], sizes = [8, 1], strides = [1, 1]} : vector<8x2xf32> to vector<8x1xf32>
    %c0_1 = arith.constant 0 : index
    %c0_2 = arith.constant 0 : index
    %3 = vector.load %arg1[%c0_1, %c0_2] : memref<8x1xi32, #tpu.memory_space<vmem>>, vector<8x1xi32>
    %4 = arith.subf %1, %2 : vector<8x1xf32>
    %5 = arith.maximumf %1, %2 : vector<8x1xf32>
    %6 = math.absf %4 : vector<8x1xf32>
    %cst = arith.constant 0.000000e+00 : f32
    %7 = vector.broadcast %cst : f32 to vector<8x1xf32>
    %8 = arith.subf %7, %6 : vector<8x1xf32>
    %9 = math.exp %8 : vector<8x1xf32>
    %cst_3 = arith.constant 1.000000e+00 : f32
    %10 = vector.broadcast %cst_3 : f32 to vector<8x1xf32>
    %11 = arith.addf %10, %9 : vector<8x1xf32>
    %12 = math.log %11 : vector<8x1xf32>
    %13 = arith.addf %5, %12 : vector<8x1xf32>
    %c0_i32 = arith.constant 0 : i32
    %14 = vector.broadcast %c0_i32 : i32 to vector<8x1xi32>
    %15 = arith.cmpi eq, %3, %14 : vector<8x1xi32>
    %16 = arith.select %15, %1, %2 : vector<8x1xi1>, vector<8x1xf32>
    %17 = arith.subf %13, %16 : vector<8x1xf32>
    %18 = vector.shape_cast %17 : vector<8x1xf32> to vector<1x8x1xf32>
    %cst_4 = arith.constant dense<0.000000e+00> : vector<1xf32>
    %19 = vector.multi_reduction <add>, %18, %cst_4 [1, 2] : vector<1x8x1xf32> to vector<1xf32>
    %20 = vector.shape_cast %19 : vector<1xf32> to vector<1x1x1xf32>
    %21 = vector.extract %20[0, 0, 0] : f32 from vector<1x1x1xf32>
    %cst_5 = arith.constant 1.250000e-01 : f32
    %22 = arith.mulf %21, %cst_5 : f32
    %c0_6 = arith.constant 0 : index
    %c0_7 = arith.constant 0 : index
    %23 = memref.load %arg3[%c0_6, %c0_7] : memref<3x3xf32, #tpu.memory_space<smem>>
    %c0_8 = arith.constant 0 : index
    %c1 = arith.constant 1 : index
    %24 = memref.load %arg3[%c0_8, %c1] : memref<3x3xf32, #tpu.memory_space<smem>>
    %c0_9 = arith.constant 0 : index
    %c2 = arith.constant 2 : index
    %25 = memref.load %arg3[%c0_9, %c2] : memref<3x3xf32, #tpu.memory_space<smem>>
    %c1_10 = arith.constant 1 : index
    %c0_11 = arith.constant 0 : index
    %26 = memref.load %arg3[%c1_10, %c0_11] : memref<3x3xf32, #tpu.memory_space<smem>>
    %c1_12 = arith.constant 1 : index
    %c1_13 = arith.constant 1 : index
    %27 = memref.load %arg3[%c1_12, %c1_13] : memref<3x3xf32, #tpu.memory_space<smem>>
    %c1_14 = arith.constant 1 : index
    %c2_15 = arith.constant 2 : index
    %28 = memref.load %arg3[%c1_14, %c2_15] : memref<3x3xf32, #tpu.memory_space<smem>>
    %c2_16 = arith.constant 2 : index
    %c0_17 = arith.constant 0 : index
    %29 = memref.load %arg3[%c2_16, %c0_17] : memref<3x3xf32, #tpu.memory_space<smem>>
    %c2_18 = arith.constant 2 : index
    %c1_19 = arith.constant 1 : index
    %30 = memref.load %arg3[%c2_18, %c1_19] : memref<3x3xf32, #tpu.memory_space<smem>>
    %c2_20 = arith.constant 2 : index
    %c2_21 = arith.constant 2 : index
    %31 = memref.load %arg3[%c2_20, %c2_21] : memref<3x3xf32, #tpu.memory_space<smem>>
    %c0_22 = arith.constant 0 : index
    %c0_23 = arith.constant 0 : index
    %32 = vector.load %arg2[%c0_22, %c0_23] : memref<4x12xf32, #tpu.memory_space<vmem>>, vector<4x12xf32>
    %cst_24 = arith.constant 0.000000e+00 : f32
    %33 = vector.broadcast %cst_24 : f32 to vector<4x1xf32>
    %cst_25 = arith.constant 0.000000e+00 : f32
    %34 = vector.broadcast %cst_25 : f32 to vector<4x1xf32>
    %35 = vector.extract_strided_slice %32 {offsets = [0, 0], sizes = [4, 1], strides = [1, 1]} : vector<4x12xf32> to vector<4x1xf32>
    %36 = vector.extract_strided_slice %32 {offsets = [0, 1], sizes = [4, 1], strides = [1, 1]} : vector<4x12xf32> to vector<4x1xf32>
    %37 = vector.extract_strided_slice %32 {offsets = [0, 3], sizes = [4, 1], strides = [1, 1]} : vector<4x12xf32> to vector<4x1xf32>
    %38 = vector.extract_strided_slice %32 {offsets = [0, 4], sizes = [4, 1], strides = [1, 1]} : vector<4x12xf32> to vector<4x1xf32>
    %39 = vector.broadcast %29 : f32 to vector<4x1xf32>
    %40 = arith.mulf %39, %37 : vector<4x1xf32>
    %41 = vector.broadcast %30 : f32 to vector<4x1xf32>
    %42 = arith.mulf %41, %38 : vector<4x1xf32>
    %43 = arith.addf %40, %42 : vector<4x1xf32>
    %44 = vector.broadcast %31 : f32 to vector<4x1xf32>
    %45 = arith.addf %43, %44 : vector<4x1xf32>
    %46 = tpu.reciprocal %45 : vector<4x1xf32> -> vector<4x1xf32>
    %47 = vector.broadcast %23 : f32 to vector<4x1xf32>
    %48 = arith.mulf %47, %37 : vector<4x1xf32>
    %49 = vector.broadcast %24 : f32 to vector<4x1xf32>
    %50 = arith.mulf %49, %38 : vector<4x1xf32>
    %51 = arith.addf %48, %50 : vector<4x1xf32>
    %52 = vector.broadcast %25 : f32 to vector<4x1xf32>
    %53 = arith.addf %51, %52 : vector<4x1xf32>
    %54 = arith.mulf %53, %46 : vector<4x1xf32>
    %55 = vector.broadcast %26 : f32 to vector<4x1xf32>
    %56 = arith.mulf %55, %37 : vector<4x1xf32>
    %57 = vector.broadcast %27 : f32 to vector<4x1xf32>
    %58 = arith.mulf %57, %38 : vector<4x1xf32>
    %59 = arith.addf %56, %58 : vector<4x1xf32>
    %60 = vector.broadcast %28 : f32 to vector<4x1xf32>
    %61 = arith.addf %59, %60 : vector<4x1xf32>
    %62 = arith.mulf %61, %46 : vector<4x1xf32>
    %63 = arith.subf %35, %54 : vector<4x1xf32>
    %64 = arith.subf %36, %62 : vector<4x1xf32>
    %65 = arith.mulf %63, %63 : vector<4x1xf32>
    %66 = arith.addf %33, %65 : vector<4x1xf32>
    %67 = arith.mulf %64, %64 : vector<4x1xf32>
    %68 = arith.addf %34, %67 : vector<4x1xf32>
    %69 = vector.extract_strided_slice %32 {offsets = [0, 6], sizes = [4, 1], strides = [1, 1]} : vector<4x12xf32> to vector<4x1xf32>
    %70 = vector.extract_strided_slice %32 {offsets = [0, 7], sizes = [4, 1], strides = [1, 1]} : vector<4x12xf32> to vector<4x1xf32>
    %71 = vector.extract_strided_slice %32 {offsets = [0, 9], sizes = [4, 1], strides = [1, 1]} : vector<4x12xf32> to vector<4x1xf32>
    %72 = vector.extract_strided_slice %32 {offsets = [0, 10], sizes = [4, 1], strides = [1, 1]} : vector<4x12xf32> to vector<4x1xf32>
    %73 = vector.broadcast %29 : f32 to vector<4x1xf32>
    %74 = arith.mulf %73, %71 : vector<4x1xf32>
    %75 = vector.broadcast %30 : f32 to vector<4x1xf32>
    %76 = arith.mulf %75, %72 : vector<4x1xf32>
    %77 = arith.addf %74, %76 : vector<4x1xf32>
    %78 = vector.broadcast %31 : f32 to vector<4x1xf32>
    %79 = arith.addf %77, %78 : vector<4x1xf32>
    %80 = tpu.reciprocal %79 : vector<4x1xf32> -> vector<4x1xf32>
    %81 = vector.broadcast %23 : f32 to vector<4x1xf32>
    %82 = arith.mulf %81, %71 : vector<4x1xf32>
    %83 = vector.broadcast %24 : f32 to vector<4x1xf32>
    %84 = arith.mulf %83, %72 : vector<4x1xf32>
    %85 = arith.addf %82, %84 : vector<4x1xf32>
    %86 = vector.broadcast %25 : f32 to vector<4x1xf32>
    %87 = arith.addf %85, %86 : vector<4x1xf32>
    %88 = arith.mulf %87, %80 : vector<4x1xf32>
    %89 = vector.broadcast %26 : f32 to vector<4x1xf32>
    %90 = arith.mulf %89, %71 : vector<4x1xf32>
    %91 = vector.broadcast %27 : f32 to vector<4x1xf32>
    %92 = arith.mulf %91, %72 : vector<4x1xf32>
    %93 = arith.addf %90, %92 : vector<4x1xf32>
    %94 = vector.broadcast %28 : f32 to vector<4x1xf32>
    %95 = arith.addf %93, %94 : vector<4x1xf32>
    %96 = arith.mulf %95, %80 : vector<4x1xf32>
    %97 = arith.subf %69, %88 : vector<4x1xf32>
    %98 = arith.subf %70, %96 : vector<4x1xf32>
    %99 = arith.mulf %97, %97 : vector<4x1xf32>
    %100 = arith.addf %66, %99 : vector<4x1xf32>
    %101 = arith.mulf %98, %98 : vector<4x1xf32>
    %102 = arith.addf %68, %101 : vector<4x1xf32>
    %103 = math.sqrt %100 : vector<4x1xf32>
    %104 = vector.shape_cast %103 : vector<4x1xf32> to vector<1x4x1xf32>
    %cst_26 = arith.constant dense<0.000000e+00> : vector<1xf32>
    %105 = vector.multi_reduction <add>, %104, %cst_26 [1, 2] : vector<1x4x1xf32> to vector<1xf32>
    %106 = vector.shape_cast %105 : vector<1xf32> to vector<1x1x1xf32>
    %107 = vector.extract %106[0, 0, 0] : f32 from vector<1x1x1xf32>
    %108 = math.sqrt %102 : vector<4x1xf32>
    %109 = vector.shape_cast %108 : vector<4x1xf32> to vector<1x4x1xf32>
    %cst_27 = arith.constant dense<0.000000e+00> : vector<1xf32>
    %110 = vector.multi_reduction <add>, %109, %cst_27 [1, 2] : vector<1x4x1xf32> to vector<1xf32>
    %111 = vector.shape_cast %110 : vector<1xf32> to vector<1x1x1xf32>
    %112 = vector.extract %111[0, 0, 0] : f32 from vector<1x1x1xf32>
    %113 = arith.addf %107, %112 : f32
    %cst_28 = arith.constant 0.0833333358 : f32
    %114 = arith.mulf %113, %cst_28 : f32
    %115 = arith.addf %22, %114 : f32
    %c0_29 = arith.constant 0 : index
    %c0_30 = arith.constant 0 : index
    %116 = memref.load %arg4[%c0_29, %c0_30] : memref<1x4xf32, #tpu.memory_space<smem>>
    memref.store %115, %arg4[%c0_29, %c0_30] : memref<1x4xf32, #tpu.memory_space<smem>>
    %c0_31 = arith.constant 0 : index
    %c1_32 = arith.constant 1 : index
    %117 = memref.load %arg4[%c0_31, %c1_32] : memref<1x4xf32, #tpu.memory_space<smem>>
    memref.store %22, %arg4[%c0_31, %c1_32] : memref<1x4xf32, #tpu.memory_space<smem>>
    %c0_33 = arith.constant 0 : index
    %c2_34 = arith.constant 2 : index
    %118 = memref.load %arg4[%c0_33, %c2_34] : memref<1x4xf32, #tpu.memory_space<smem>>
    memref.store %114, %arg4[%c0_33, %c2_34] : memref<1x4xf32, #tpu.memory_space<smem>>
    %cst_35 = arith.constant 0.000000e+00 : f32
    %c0_36 = arith.constant 0 : index
    %c3 = arith.constant 3 : index
    %119 = memref.load %arg4[%c0_36, %c3] : memref<1x4xf32, #tpu.memory_space<smem>>
    memref.store %cst_35, %arg4[%c0_36, %c3] : memref<1x4xf32, #tpu.memory_space<smem>>
    return
  }
}

</mosaic_0001>

<llo_original>
// kernel: tpu_custom_call.1
$region0: #{tpu_custom_call.1}
  #allocation0 [shape = 'u32[]', space=smem, size = 0x4, offset = 0x4, fixed_abs, tag = 'smem constant byte address 0x4 - core index']
  #allocation1 [shape = 'u32[72,128]{1,0:T(1,128)}', space=vmem, size = 0x9000, scoped, tag = 'internal scratch']
  %s0 = inlined_call_operand.vmem [shape: f32[8,2], index: 0, kind: input, shape index: {}]
  %s1 = inlined_call_operand.vmem [shape: s32[8,1], index: 1, kind: input, shape index: {}]
  %s2 = inlined_call_operand.vmem [shape: f32[4,12], index: 2, kind: input, shape index: {}]
  %s3 = inlined_call_operand.vmem [shape: f32[3,3], index: 3, kind: input, shape index: {}]
  %s4 = inlined_call_operand.hbm [shape: f32[1,4], index: 4, kind: output, shape index: {}]
  %s5 = sld [smem:[#allocation0]]
  $region30: #{tpu_custom_call.1} parent=0
    _
  %s7 = ssub.s32 1, %s5
  %s8 = scalar_select 0, %s7, %s5
  $region1: #{tpu_custom_call.1} parent=0
    #allocation2 [shape = 'u8[2048]{0}', space=smem, size = 0x800, scoped, tag = 'input window, operand 3, single buffered']
    #allocation3 [shape = 's32[1]{0}', space=sflag, size = 0x4, scoped, tag = 'scoped memory for tpu_custom_call.1']
    #allocation4 [shape = 's32[1]{0}', space=sflag, size = 0x4, scoped, tag = 'scoped memory for tpu_custom_call.1']
    #allocation5 [shape = 'u8[512]{0}', space=smem, size = 0x200, scoped, tag = 'output window, operand 0, single buffered']
    %9 = vsyncpa [#allocation4], 0
    %10 = vsyncpa [#allocation3], 0
    // Predicated region
    $region2: #{tpu_custom_call.1} parent=1 // pred_check
      _
    $region3: #{tpu_custom_call.1} parent=1 // pred_check_branch
      %12 = sbr.rel (0) target = $region5
    $region4: #{tpu_custom_call.1} parent=1 // pred_region
      _
    $region5: #{tpu_custom_call.1} parent=1 // pred_fallthru
      _
    // Predicated region
    $region6: #{tpu_custom_call.1} parent=1 // pred_check
      _
    $region7: #{tpu_custom_call.1} parent=1 // pred_check_branch
      %14 = sbr.rel (0) target = $region9
    $region8: #{tpu_custom_call.1} parent=1 // pred_region
      _
    $region9: #{tpu_custom_call.1} parent=1 // pred_fallthru
      _
    // Predicated region
    $region10: #{tpu_custom_call.1} parent=1 // pred_check
      _
    $region11: #{tpu_custom_call.1} parent=1 // pred_check_branch
      %16 = sbr.rel (0) target = $region13
    $region12: #{tpu_custom_call.1} parent=1 // pred_region
      _
    $region13: #{tpu_custom_call.1} parent=1 // pred_fallthru
      _
    // Predicated region
    $region14: #{tpu_custom_call.1} parent=1 // pred_check
      _
    $region15: #{tpu_custom_call.1} parent=1 // pred_check_branch
      %18 = sbr.rel (0) target = $region17
    $region16: #{tpu_custom_call.1} parent=1 // pred_region
      %20 = vsyncadd [#allocation4], 0
      %s22 = sshll.u32 %s3, 4
      %s23 = int_to_ptr.vmem [resolvable:$true] %s22
      %25 = dma.vmem_to_smem %s23, 64, [#allocation2], [#allocation4]
    $region17: #{tpu_custom_call.1} parent=1 // pred_fallthru
      _
    // Predicated region
    $region18: #{tpu_custom_call.1} parent=1 // pred_check
      _
    $region19: #{tpu_custom_call.1} parent=1 // pred_check_branch
      %27 = sbr.rel (0) target = $region21
    $region20: #{tpu_custom_call.1} parent=1 // pred_region
      %29 = dma.done [#allocation4], 64
    $region21: #{tpu_custom_call.1} parent=1 // pred_fallthru
      _
    %30 = sfence
    %v31 = vld [vmem:[%s0] sm:$0xff]
    %v32 = vld [vmem:[%s1] sm:$0xff]
    %34 = vrot.lane.b32.xlu0 %v31, 127
    %v35 = vpop.permute.xlu0 %34
    %v37 = vsub.f32 %v31, %v35
    %v38 = vmax.f32 %v31, %v35
    %v39 = vand.u32 2147483647, %v37
    %v40 = vsub.f32 0.0, %v39
    %v41 = vmul.f32 %v40, 1.442695
    %v42 = vpow.pop %v41
    %v43 = vadd.f32 %v42, 1.0
    %v44 = vlog2.pop %v43
    %v45 = vmul.f32 %v44, 0.6931472
    %v46 = vadd.f32 %v38, %v45
    %vm47 = vcmp.eq.s32.totalorder %v32, 0
    %v48 = vsel %vm47, %v31, %v35
    %v49 = vsub.f32 %v46, %v48
    %vm50 = vcmask 7168
    %v51 = vsel %vm50, %v49, 0.0
    %52 = vadd.xlane.f32.xlu0 %v51
    %v53 = vpop.xlane.xlu0 %52
    %v54 = vrot.slane %v53, 4
    %v55 = vadd.f32 %v53, %v54
    %v56 = vrot.slane %v55, 2
    %v57 = vadd.f32 %v55, %v56
    %v58 = vrot.slane %v57, 1
    %v59 = vadd.f32 %v57, %v58
    %s60 = vtos %v59
    %s61 = smul.f32 %s60, 0.125
    %s62 = sld [smem:[#allocation2]]
    %s63 = sld [smem:[#allocation2 + $0x1]]
    %s64 = sld [smem:[#allocation2 + $0x2]]
    %s65 = sld [smem:[#allocation2 + $0x80]]
    %s66 = sld [smem:[#allocation2 + $0x81]]
    %s67 = sld [smem:[#allocation2 + $0x82]]
    %s68 = sld [smem:[#allocation2 + $0x100]]
    %s69 = sld [smem:[#allocation2 + $0x101]]
    %s70 = sld [smem:[#allocation2 + $0x102]]
    %v71 = vld [vmem:[%s2] sm:$0xf]
    %v72 = vstv %s68
    %v73 = vmul.f32 %v72, %v71
    %v74 = vstv %s69
    %v75 = vmul.f32 %v74, %v71
    %77 = vrot.lane.b32.xlu0 %v75, 127
    %v78 = vpop.permute.xlu0 %77
    %v80 = vadd.f32 %v73, %v78
    %v81 = vstv %s70
    %v82 = vadd.f32 %v80, %v81
    %v83 = vrcp.pop %v82
    %v84 = vmul.f32 %v82, %v83
    %v85 = vsub.f32 1.0, %v84
    %v86 = vmul.f32 %v83, %v85
    %v87 = vadd.f32 %v83, %v86
    %vm88 = vweird.f32 %v82
    %vm89 = vweird.f32 %v83
    %vm90 = vmor %vm88, %vm89
    %v91 = vsel %vm90, %v83, %v87
    %v92 = vand.u32 2147483647, %v82
    %vm93 = vcmp.eq.f32.partialorder %v92, 8.507059e+37
    %v94 = vand.u32 %v82, 2147483648
    %v95 = vor.u32 1.1754944e-38, %v94
    %v96 = vsel %vm93, %v95, %v91
    %v97 = vstv %s62
    %v98 = vmul.f32 %v97, %v71
    %v99 = vstv %s63
    %v100 = vmul.f32 %v99, %v71
    %102 = vrot.lane.b32.xlu0 %v100, 127
    %v103 = vpop.permute.xlu0 %102
    %v105 = vadd.f32 %v98, %v103
    %v106 = vstv %s64
    %v107 = vadd.f32 %v105, %v106
    %v108 = vmul.f32 %v107, %v96
    %v109 = vstv %s65
    %v110 = vmul.f32 %v109, %v71
    %v111 = vstv %s66
    %v112 = vmul.f32 %v111, %v71
    %114 = vrot.lane.b32.xlu0 %v112, 127
    %v115 = vpop.permute.xlu0 %114
    %v117 = vadd.f32 %v110, %v115
    %v118 = vstv %s67
    %v119 = vadd.f32 %v117, %v118
    %v120 = vmul.f32 %v119, %v96
    %122 = vrot.lane.b32.xlu0 %v108, 125
    %v123 = vpop.permute.xlu0 %122
    %v125 = vsub.f32 %v71, %v123
    %127 = vrot.lane.b32.xlu0 %v120, 126
    %v128 = vpop.permute.xlu0 %127
    %v130 = vsub.f32 %v71, %v128
    %v131 = vmul.f32 %v125, %v125
    %v132 = vadd.f32 %v131, 0.0
    %v133 = vmul.f32 %v130, %v130
    %v134 = vadd.f32 %v133, 0.0
    %136 = vrot.lane.b32.xlu0 %v131, 122
    %v137 = vpop.permute.xlu0 %136
    %v139 = vadd.f32 %v132, %v137
    %141 = vrot.lane.b32.xlu0 %v133, 122
    %v142 = vpop.permute.xlu0 %141
    %v144 = vadd.f32 %v134, %v142
    %v145 = vrsqrt.pop %v139
    %v146 = vmul.f32 %v145, %v139
    %v147 = vmul.f32 %v146, %v145
    %v148 = vmul.f32 0.5, %v147
    %v149 = vsub.f32 1.5, %v148
    %v150 = vmul.f32 %v145, %v149
    %v151 = vmul.f32 %v139, %v150
    %vm152 = vcmp.eq.f32.partialorder %v139, inf
    %v153 = vsel %vm152, %v139, %v151
    %vm154 = vcmp.eq.f32.partialorder %v139, 0.0
    %v155 = vand.u32 %v139, 2147483648
    %v156 = vsel %vm154, %v155, %v153
    %vm157 = vcmask 3072
    %v158 = vsel %vm157, %v156, 0.0
    %159 = vadd.xlane.f32.xlu0 %v158
    %v160 = vpop.xlane.xlu0 %159
    %v161 = vrot.slane %v160, 4
    %v162 = vadd.f32 %v160, %v161
    %v163 = vrot.slane %v162, 2
    %v164 = vadd.f32 %v162, %v163
    %v165 = vrot.slane %v164, 1
    %v166 = vadd.f32 %v164, %v165
    %s167 = vtos %v166
    %v168 = vrsqrt.pop %v144
    %v169 = vmul.f32 %v168, %v144
    %v170 = vmul.f32 %v169, %v168
    %v171 = vmul.f32 0.5, %v170
    %v172 = vsub.f32 1.5, %v171
    %v173 = vmul.f32 %v168, %v172
    %v174 = vmul.f32 %v144, %v173
    %vm175 = vcmp.eq.f32.partialorder %v144, inf
    %v176 = vsel %vm175, %v144, %v174
    %vm177 = vcmp.eq.f32.partialorder %v144, 0.0
    %v178 = vand.u32 %v144, 2147483648
    %v179 = vsel %vm177, %v178, %v176
    %181 = vrot.lane.b32.xlu0 %v179, 127
    %v182 = vpop.permute.xlu0 %181
    %v184 = vsel %vm157, %v182, 0.0
    %185 = vadd.xlane.f32.xlu0 %v184
    %v186 = vpop.xlane.xlu0 %185
    %v187 = vrot.slane %v186, 4
    %v188 = vadd.f32 %v186, %v187
    %v189 = vrot.slane %v188, 2
    %v190 = vadd.f32 %v188, %v189
    %v191 = vrot.slane %v190, 1
    %v192 = vadd.f32 %v190, %v191
    %s193 = vtos %v192
    %s194 = sadd.f32 %s167, %s193
    %s195 = smul.f32 %s194, 0.083333336
    %s196 = sadd.f32 %s61, %s195
    %s197 = scalar_lea.smem [#allocation5], 0
    %198 = sst [smem:[%s197]] %s196
    %s199 = scalar_lea.smem [#allocation5], 1
    %200 = sst [smem:[%s199]] %s61
    %s201 = scalar_lea.smem [#allocation5], 2
    %202 = sst [smem:[%s201]] %s195
    %s203 = scalar_lea.smem [#allocation5], 3
    %204 = sst [smem:[%s203]] 0.0
    // Predicated region
    $region22: #{tpu_custom_call.1} parent=1 // pred_check
      _
    $region23: #{tpu_custom_call.1} parent=1 // pred_check_branch
      %206 = sbr.rel (0) target = $region25
    $region24: #{tpu_custom_call.1} parent=1 // pred_region
      %208 = vsyncadd [#allocation3], 0
      %s210 = sshll.u32 %s4, 4
      %s211 = int_to_ptr.hbm [resolvable:$true] %s210
      %213 = dma.smem_to_hbm [#allocation5], 16, %s211, [#allocation3]
    $region25: #{tpu_custom_call.1} parent=1 // pred_fallthru
      _
    // Predicated region
    $region26: #{tpu_custom_call.1} parent=1 // pred_check
      _
    $region27: #{tpu_custom_call.1} parent=1 // pred_check_branch
      %215 = sbr.rel (0) target = $region29
    $region28: #{tpu_custom_call.1} parent=1 // pred_region
      %217 = dma.done [#allocation3], 16
    $region29: #{tpu_custom_call.1} parent=1 // pred_fallthru
      _
    %218 = sfence
    %219 = vsyncpa [#allocation3], 1
    %220 = vsyncpa [#allocation4], 1

</llo_original>
